<compile_context>
chip_gen: v7x
topology: tpu7x:2x2x1
jax: 0.10.0
libtpu: 0.0.40
codegen_flags: <defaults>
</compile_context>

<pallas_src>
import functools

import jax
import jax.numpy as jnp
from jax.experimental import pallas as pl
from jax.experimental.pallas import tpu as pltpu

EPS = 1e-6

# ~4 MiB per f32 x tile -> with double-buffered input + output plus the in-body
# f32 temps this stays comfortably under a 32 MiB scoped limit on every
# generation (v5e/v6e physical 128 MiB, v7x physical 64 MiB per TC).
_TARGET_TILE_BYTES = 4 * 1024 * 1024
_MIN_TILE_BYTES = 512 * 1024
_MIN_GRID_STEPS = 4
_VMEM_LIMIT_BYTES = 32 * 1024 * 1024


def _layernorm_kernel(x_ref, a_ref, b_ref, o_ref, *, eps: float, feat: int):
    # x_ref: (row_tile, F)   a_ref/b_ref: (1, F)   o_ref: (row_tile, F)
    x = x_ref[...].astype(jnp.float32)

    mean = jnp.mean(x, axis=-1, keepdims=True)
    diff = x - mean
    # torch.std uses Bessel's correction (divide by n-1).
    var = jnp.sum(diff * diff, axis=-1, keepdims=True) * jnp.float32(
        1.0 / (feat - 1)
    )
    std = jnp.sqrt(var)

    # Exact reciprocal of a (row_tile, 1) tensor: tiny work, no accuracy loss.
    # The kernel is HBM-bound, so the divide is completely hidden.
    inv = jnp.float32(1.0) / (std + jnp.float32(eps))

    a = a_ref[...].astype(jnp.float32)  # (1, F) broadcasts over rows
    b = b_ref[...].astype(jnp.float32)

    o_ref[...] = (diff * inv * a + b).astype(o_ref.dtype)


def _pick_row_tile(rows: int, feat: int, itemsize: int) -> int:
    """Row tile sized from a VMEM byte budget, capped so the grid pipelines."""
    # Sublane packing of the I/O dtype: 8 for f32, 16 for bf16, 32 for int8/fp8.
    sub = max(8, 32 // max(1, itemsize))
    row_bytes = feat * 4  # internal f32 slab dominates the VMEM footprint

    # Largest tile that stays near the byte target.
    budget_rows = max(sub, _TARGET_TILE_BYTES // row_bytes)
    # Smallest tile worth paying per-step overhead for (~0.5 MiB).
    min_rows = max(sub, _MIN_TILE_BYTES // row_bytes)
    # Aim for >= _MIN_GRID_STEPS grid steps (pipelining + v7x megacore),
    # without dropping below min_rows.
    steps_cap = max(min_rows, pl.cdiv(rows, _MIN_GRID_STEPS))

    tile = min(budget_rows, steps_cap)
    if tile >= rows:
        # Whole row range in one block (block dim == array dim is always legal).
        return rows
    # Partial tiling: round down to the sublane-packing multiple.
    return max(sub, (tile // sub) * sub)


def layernorm_pallas(x, a_2, b_2, eps: float = EPS, out_dtype=None):
    """x: (..., F) any leading dims; a_2, b_2: (F,).

    Internal math is always f32.  Output dtype defaults to x.dtype (saves HBM
    traffic for bf16 activations); pass out_dtype=jnp.float32 for strict
    torch ``x.float()`` parity with non-f32 inputs.
    """
    orig_shape = x.shape
    feat = orig_shape[-1]
    if feat < 2:
        raise ValueError("LayerNorm with ddof=1 std requires features >= 2")

    if out_dtype is None:
        out_dtype = x.dtype

    rows = 1
    for d in orig_shape[:-1]:
        rows *= d

    x2 = x.reshape(rows, feat)
    a2 = a_2.reshape(1, feat)
    b2 = b_2.reshape(1, feat)

    row_tile = _pick_row_tile(rows, feat, jnp.dtype(x.dtype).itemsize)
    grid = (pl.cdiv(rows, row_tile),)  # ragged last tile handled by Pallas

    out = pl.pallas_call(
        functools.partial(_layernorm_kernel, eps=eps, feat=feat),
        out_shape=jax.ShapeDtypeStruct((rows, feat), out_dtype),
        grid_spec=pltpu.PrefetchScalarGridSpec(
            num_scalar_prefetch=0,
            grid=grid,
            in_specs=[
                pl.BlockSpec((row_tile, feat), lambda i: (i, 0)),
                pl.BlockSpec((1, feat), lambda i: (0, 0)),
                pl.BlockSpec((1, feat), lambda i: (0, 0)),
            ],
            out_specs=pl.BlockSpec((row_tile, feat), lambda i: (i, 0)),
        ),
        compiler_params=pltpu.CompilerParams(
            dimension_semantics=("parallel",),
            vmem_limit_bytes=_VMEM_LIMIT_BYTES,
        ),
    )(x2, a2, b2)

    return out.reshape(orig_shape)


if __name__ == "__main__":
    key = jax.random.PRNGKey(0)

    batch, seq, hidden = 2, 8, 32
    x = jax.random.normal(key, (batch, seq, hidden), dtype=jnp.float32)

    # Parameters exactly as in __init__: a_2 = ones(features), b_2 = zeros(features)
    a_2 = jnp.ones((hidden,), dtype=jnp.float32)
    b_2 = jnp.zeros((hidden,), dtype=jnp.float32)

    out = layernorm_pallas(x, a_2, b_2)
    out = jax.block_until_ready(out)

    # Reference in plain JAX (same semantics: ddof=1 std, eps added to std).
    xf = x.astype(jnp.float32)
    mean = jnp.mean(xf, axis=-1, keepdims=True)
    std = jnp.std(xf, axis=-1, keepdims=True, ddof=1)
    ref = a_2 * (xf - mean) / (std + EPS) + b_2

    assert out.shape == x.shape and out.dtype == jnp.float32
    err = float(jnp.max(jnp.abs(out - ref)))
    assert jnp.allclose(out, ref, atol=1e-5, rtol=1e-5), err

    print("KERNEL_OK")
</pallas_src>

<mosaic_0001>
module attributes {stable_mosaic.version = 11 : i64} {
  func.func @_layernorm_kernel(%arg0: i32, %arg1: memref<16x32xf32, #tpu.memory_space<vmem>>, %arg2: memref<1x32xf32, #tpu.memory_space<vmem>>, %arg3: memref<1x32xf32, #tpu.memory_space<vmem>>, %arg4: memref<16x32xf32, #tpu.memory_space<vmem>>) attributes {dimension_semantics = [#tpu.dimension_semantics<parallel>], iteration_bounds = array<i64: 1>, scalar_prefetch = 0 : i64, scratch_operands = 0 : i64, tpu.core_type = #tpu.core_type<tc>, window_params = [{transform_indices = @transform_0, window_bounds = array<i64: 16, 32>}, {pipeline_mode = #tpu.pipeline_mode<synchronous>, transform_indices = @transform_1, window_bounds = array<i64: 1, 32>}, {pipeline_mode = #tpu.pipeline_mode<synchronous>, transform_indices = @transform_2, window_bounds = array<i64: 1, 32>}, {transform_indices = @transform_3, window_bounds = array<i64: 16, 32>}]} {
    %c0 = arith.constant 0 : index
    %c0_0 = arith.constant 0 : index
    %0 = vector.load %arg1[%c0, %c0_0] : memref<16x32xf32, #tpu.memory_space<vmem>>, vector<16x32xf32>
    %cst = arith.constant dense<0.000000e+00> : vector<16xf32>
    %1 = vector.multi_reduction <add>, %0, %cst [1] : vector<16x32xf32> to vector<16xf32>
    %2 = vector.shape_cast %1 : vector<16xf32> to vector<16x1xf32>
    %cst_1 = arith.constant 3.200000e+01 : f32
    %3 = vector.broadcast %cst_1 : f32 to vector<16x1xf32>
    %4 = arith.divf %2, %3 : vector<16x1xf32>
    %5 = vector.broadcast %4 : vector<16x1xf32> to vector<16x32xf32>
    %6 = arith.subf %0, %5 : vector<16x32xf32>
    %7 = arith.mulf %6, %6 : vector<16x32xf32>
    %cst_2 = arith.constant dense<0.000000e+00> : vector<16xf32>
    %8 = vector.multi_reduction <add>, %7, %cst_2 [1] : vector<16x32xf32> to vector<16xf32>
    %9 = vector.shape_cast %8 : vector<16xf32> to vector<16x1xf32>
    %cst_3 = arith.constant 0.0322580636 : f32
    %10 = vector.broadcast %cst_3 : f32 to vector<16x1xf32>
    %11 = arith.mulf %9, %10 : vector<16x1xf32>
    %12 = math.sqrt %11 : vector<16x1xf32>
    %cst_4 = arith.constant 9.99999997E-7 : f32
    %13 = vector.broadcast %cst_4 : f32 to vector<16x1xf32>
    %14 = arith.addf %12, %13 : vector<16x1xf32>
    %cst_5 = arith.constant 1.000000e+00 : f32
    %15 = vector.broadcast %cst_5 : f32 to vector<16x1xf32>
    %16 = arith.divf %15, %14 : vector<16x1xf32>
    %c0_6 = arith.constant 0 : index
    %c0_7 = arith.constant 0 : index
    %17 = vector.load %arg2[%c0_6, %c0_7] : memref<1x32xf32, #tpu.memory_space<vmem>>, vector<1x32xf32>
    %c0_8 = arith.constant 0 : index
    %c0_9 = arith.constant 0 : index
    %18 = vector.load %arg3[%c0_8, %c0_9] : memref<1x32xf32, #tpu.memory_space<vmem>>, vector<1x32xf32>
    %19 = vector.broadcast %16 : vector<16x1xf32> to vector<16x32xf32>
    %20 = arith.mulf %6, %19 : vector<16x32xf32>
    %21 = vector.broadcast %17 : vector<1x32xf32> to vector<16x32xf32>
    %22 = arith.mulf %20, %21 : vector<16x32xf32>
    %23 = vector.broadcast %18 : vector<1x32xf32> to vector<16x32xf32>
    %24 = arith.addf %22, %23 : vector<16x32xf32>
    %c0_10 = arith.constant 0 : index
    %c0_11 = arith.constant 0 : index
    %25 = vector.load %arg4[%c0_10, %c0_11] : memref<16x32xf32, #tpu.memory_space<vmem>>, vector<16x32xf32>
    tpu.vector_store %arg4[%c0_10, %c0_11], %24 {strides = array<i32>} : memref<16x32xf32, #tpu.memory_space<vmem>>, vector<16x32xf32>,
    return
  }
  func.func @transform_0(%arg0: i32) -> (i32, i32) {
    %c0_i32 = arith.constant 0 : i32
    %c0_i32_0 = arith.constant 0 : i32
    return %arg0, %c0_i32 : i32, i32
  }
  func.func @transform_1(%arg0: i32) -> (i32, i32) {
    %c0_i32 = arith.constant 0 : i32
    %c0_i32_0 = arith.constant 0 : i32
    %c0_i32_1 = arith.constant 0 : i32
    return %c0_i32, %c0_i32_0 : i32, i32
  }
  func.func @transform_2(%arg0: i32) -> (i32, i32) {
    %c0_i32 = arith.constant 0 : i32
    %c0_i32_0 = arith.constant 0 : i32
    %c0_i32_1 = arith.constant 0 : i32
    return %c0_i32, %c0_i32_0 : i32, i32
  }
  func.func @transform_3(%arg0: i32) -> (i32, i32) {
    %c0_i32 = arith.constant 0 : i32
    %c0_i32_0 = arith.constant 0 : i32
    return %arg0, %c0_i32 : i32, i32
  }
}

</mosaic_0001>

<llo_original>
// kernel: tpu_custom_call.1
$region0: #{tpu_custom_call.1}
  #allocation0 [shape = 'u32[]', space=smem, size = 0x4, offset = 0x4, fixed_abs, tag = 'smem constant byte address 0x4 - core index']
  #allocation1 [shape = 'u32[144,128]{1,0:T(1,128)}', space=vmem, size = 0x12000, scoped, tag = 'internal scratch']
  %s0 = inlined_call_operand.hbm [shape: f32[16,32], index: 0, kind: input, shape index: {}]
  %s1 = inlined_call_operand.vmem [shape: f32[1,32], index: 1, kind: input, shape index: {}]
  %s2 = inlined_call_operand.vmem [shape: f32[1,32], index: 2, kind: input, shape index: {}]
  %s3 = inlined_call_operand.hbm [shape: f32[16,32], index: 3, kind: output, shape index: {}]
  %s4 = sld [smem:[#allocation0]]
  $region26: #{tpu_custom_call.1} parent=0
    _
  %s6 = ssub.s32 1, %s4
  %s7 = scalar_select 0, %s6, %s4
  $region1: #{tpu_custom_call.1} parent=0
    #allocation2 [shape = 'u8[8192]{0}', space=vmem, size = 0x2000, scoped, tag = 'input window, operand 0, single buffered']
    #allocation3 [shape = 's32[1]{0}', space=sflag, size = 0x4, scoped, tag = 'scoped memory for tpu_custom_call.1']
    #allocation4 [shape = 's32[1]{0}', space=sflag, size = 0x4, scoped, tag = 'scoped memory for tpu_custom_call.1']
    #allocation5 [shape = 'u8[8192]{0}', space=vmem, size = 0x2000, scoped, tag = 'output window, operand 0, single buffered']
    %8 = vsyncpa [#allocation3], 0
    %9 = vsyncpa [#allocation4], 0
    // Predicated region
    $region2: #{tpu_custom_call.1} parent=1 // pred_check
      _
    $region3: #{tpu_custom_call.1} parent=1 // pred_check_branch
      %11 = sbr.rel (0) target = $region5
    $region4: #{tpu_custom_call.1} parent=1 // pred_region
      %s13 = ssub.s32 256, 256
      %14 = vsyncadd [#allocation3], %s13
      %s15 = sshll.u32 [#allocation2], 4
      %s16 = int_to_ptr.vmem [resolvable:$true] %s15
      %21 = dma.hbm_to_vmem [thread:$0]  %s0, 256, %s16, [#allocation3], 128, 128, 8
    $region5: #{tpu_custom_call.1} parent=1 // pred_fallthru
      _
    // Predicated region
    $region6: #{tpu_custom_call.1} parent=1 // pred_check
      _
    $region7: #{tpu_custom_call.1} parent=1 // pred_check_branch
      %23 = sbr.rel (0) target = $region9
    $region8: #{tpu_custom_call.1} parent=1 // pred_region
      _
    $region9: #{tpu_custom_call.1} parent=1 // pred_fallthru
      _
    // Predicated region
    $region10: #{tpu_custom_call.1} parent=1 // pred_check
      _
    $region11: #{tpu_custom_call.1} parent=1 // pred_check_branch
      %25 = sbr.rel (0) target = $region13
    $region12: #{tpu_custom_call.1} parent=1 // pred_region
      _
    $region13: #{tpu_custom_call.1} parent=1 // pred_fallthru
      _
    // Predicated region
    $region14: #{tpu_custom_call.1} parent=1 // pred_check
      _
    $region15: #{tpu_custom_call.1} parent=1 // pred_check_branch
      %27 = sbr.rel (0) target = $region17
    $region16: #{tpu_custom_call.1} parent=1 // pred_region
      %28 = dma.done [#allocation3], 256
    $region17: #{tpu_custom_call.1} parent=1 // pred_fallthru
      _
    %v29 = vld [vmem:[#allocation2] sm:$0xff]
    %v30 = vld [vmem:[#allocation2 + $0x8] sm:$0xff]
    %vm31 = vcmask 261120
    %v32 = vsel %vm31, %v29, 0.0
    %33 = vadd.xlane.f32.xlu0 %v32
    %v34 = vpop.xlane.xlu0 %33
    %v35 = vsel %vm31, %v30, 0.0
    %36 = vadd.xlane.f32.xlu0 %v35
    %v37 = vpop.xlane.xlu0 %36
    %v38 = vrcp.pop 32.0
    %v39 = vmul.f32 %v34, %v38
    %v40 = vmul.f32 %v37, %v38
    %v41 = vsub.f32 %v29, %v39
    %v42 = vsub.f32 %v30, %v40
    %v43 = vmul.f32 %v41, %v41
    %v44 = vmul.f32 %v42, %v42
    %v45 = vsel %vm31, %v43, 0.0
    %46 = vadd.xlane.f32.xlu0 %v45
    %v47 = vpop.xlane.xlu0 %46
    %v48 = vsel %vm31, %v44, 0.0
    %49 = vadd.xlane.f32.xlu0 %v48
    %v50 = vpop.xlane.xlu0 %49
    %v51 = vmul.f32 %v47, 0.032258064
    %v52 = vmul.f32 %v50, 0.032258064
    %v53 = vrsqrt.pop %v51
    %v54 = vmul.f32 %v51, %v53
    %vm55 = vcmp.eq.f32.partialorder %v51, inf
    %v56 = vsel %vm55, %v51, %v54
    %vm57 = vcmp.eq.f32.partialorder %v51, 0.0
    %v58 = vand.u32 %v51, 2147483648
    %v59 = vsel %vm57, %v58, %v56
    %v60 = vrsqrt.pop %v52
    %v61 = vmul.f32 %v52, %v60
    %vm62 = vcmp.eq.f32.partialorder %v52, inf
    %v63 = vsel %vm62, %v52, %v61
    %vm64 = vcmp.eq.f32.partialorder %v52, 0.0
    %v65 = vand.u32 %v52, 2147483648
    %v66 = vsel %vm64, %v65, %v63
    %v67 = vadd.f32 %v59, 1e-06
    %v68 = vadd.f32 %v66, 1e-06
    %v69 = vrcp.pop %v67
    %v70 = vmul.f32 1.0, %v69
    %v71 = vrcp.pop %v68
    %v72 = vmul.f32 1.0, %v71
    %v73 = vld [vmem:[%s1] sm:$0x1]
    %v74 = vld [vmem:[%s2] sm:$0x1]
    %v75 = vmul.f32 %v41, %v70
    %v76 = vmul.f32 %v42, %v72
    %v78 = vlaneseq
    %v79 = vshrl.u32 %v78, 7
    %v80 = vsub.s32 0, %v79
    %v81 = vrot.slane %v73, %v80
    %v83 = vmul.f32 %v75, %v81
    %v84 = vmul.f32 %v76, %v81
    %v86 = vlaneseq
    %v87 = vshrl.u32 %v86, 7
    %v88 = vsub.s32 0, %v87
    %v89 = vrot.slane %v74, %v88
    %v91 = vadd.f32 %v83, %v89
    %v92 = vadd.f32 %v84, %v89
    %93 = vst.msk [vmem:[#allocation5] sm:$0xff] %vm31, %v91
    %94 = vst.msk [vmem:[#allocation5 + $0x8] sm:$0xff] %vm31, %v92
    // Predicated region
    $region18: #{tpu_custom_call.1} parent=1 // pred_check
      _
    $region19: #{tpu_custom_call.1} parent=1 // pred_check_branch
      %96 = sbr.rel (0) target = $region21
    $region20: #{tpu_custom_call.1} parent=1 // pred_region
      %s98 = ssub.s32 256, 256
      %99 = vsyncadd [#allocation4], %s98
      %s100 = sshll.u32 [#allocation5], 4
      %s101 = int_to_ptr.vmem [resolvable:$true] %s100
      %106 = dma.vmem_to_hbm [thread:$0]  %s101, 256, %s3, [#allocation4], 128, 128, 8
    $region21: #{tpu_custom_call.1} parent=1 // pred_fallthru
      _
    // Predicated region
    $region22: #{tpu_custom_call.1} parent=1 // pred_check
      _
    $region23: #{tpu_custom_call.1} parent=1 // pred_check_branch
      %108 = sbr.rel (0) target = $region25
    $region24: #{tpu_custom_call.1} parent=1 // pred_region
      %109 = dma.done [#allocation4], 256
    $region25: #{tpu_custom_call.1} parent=1 // pred_fallthru
      _
    %110 = vsyncpa [#allocation3], 1
    %111 = vsyncpa [#allocation4], 1

</llo_original>
